<compile_context>
chip_gen: v5e
topology: v5e:2x2
jax: 0.10.0
libtpu: 0.0.40
codegen_flags: <defaults>
</compile_context>

<pallas_src>
import jax
import jax.numpy as jnp
from jax.experimental import pallas as pl
from jax.experimental.pallas import tpu as pltpu


def attention_kernel(len_ref, hp_ref, enc_ref, we_ref, v_ref, out_ref, score_sc):
    """Grid = (batch blocks ["parallel"], T blocks ["arbitrary"]).

    Shapes seen by the kernel:
      len_ref  : VMEM (1, BB)        int32  valid sequence lengths
      hp_ref   : VMEM (BB, H)        f32    hidden @ Wh^T + b (hoisted)
      enc_ref  : VMEM (T_blk, BB, H) f32/bf16  encoder outputs (native layout)
      we_ref   : VMEM (H, H)                attn.weight[:, H:].T
      v_ref    : VMEM (1, H)         f32    v as a row vector
      out_ref  : VMEM (T, BB)        f32    softmax weights (written last step)
      score_sc : VMEM (T, BB)        f32    running raw scores
    """
    T_blk, BB, H = enc_ref.shape
    T = out_ref.shape[0]
    t = pl.program_id(1)

    # Encoder-side projection on the MXU with a tall M = T_blk * BB.
    e = enc_ref[...].reshape(T_blk * BB, H)
    energy = jnp.dot(e, we_ref[...], preferred_element_type=jnp.float32)
    energy = energy.reshape(T_blk, BB, H) + hp_ref[...][None].astype(jnp.float32)
    energy = jnp.maximum(energy, 0.0)                           # ReLU

    # scores[t, b] = sum_h energy[t, b, h] * v[h]  -> (T_blk, BB)
    scores_blk = jnp.sum(energy * v_ref[...][None].astype(jnp.float32), axis=-1)

    t0 = pl.multiple_of(t * T_blk, T_blk)
    score_sc[pl.ds(t0, T_blk), :] = scores_blk

    # Masked softmax over the first len_seq[b] timesteps, once per batch block.
    @pl.when(t == pl.num_programs(1) - 1)
    def _finalize():
        s_all = score_sc[...]                                   # (T, BB)
        lens = len_ref[...]                                     # (1, BB)
        t_idx = jax.lax.broadcasted_iota(jnp.int32, (T, BB), 0)
        mask = t_idx < lens                                     # (T, BB)

        s = jnp.where(mask, s_all, -jnp.inf)
        m = jnp.max(s, axis=0, keepdims=True)                   # (1, BB)
        p = jnp.where(mask, jnp.exp(s - m), 0.0)                # (T, BB)
        denom = jnp.sum(p, axis=0, keepdims=True)               # (1, BB)

        # EUP reciprocal + one Newton-Raphson step (full f32 accuracy).
        r = pl.reciprocal(denom, approx=True)
        r = r * (2.0 - denom * r)

        # NOTE: len_seq[b] == 0 yields NaN for that row, matching the
        # PyTorch / JAX reference (softmax over an empty slice).
        out_ref[...] = p * r


def _divisors_desc(n):
    return [d for d in range(n, 0, -1) if n % d == 0]


def _vmem_budget_and_limit():
    """Per-generation VMEM budget for our pipeline + scoped VMEM limit."""
    phys = 64 << 20  # conservative default: v7x per-TensorCore VMEM
    try:
        info = pltpu.get_tpu_info()
        phys = int(getattr(info, "vmem_capacity_bytes", phys))
    except Exception:
        pass
    budget = phys // 2                       # working set for our buffers
    limit = min(phys * 3 // 4, 100 << 20)    # raised scoped limit, w/ headroom
    return budget, limit


def _choose_blocks(B, T, H, enc_itemsize, budget_bytes):
    """Pick (BB, T_blk): the biggest blocks that fit the VMEM budget.

    BB is a sublane-aligned (multiple of 8) divisor of B, or B itself when
    B % 8 != 0 so the block equals the full dim and stays layout-legal; when
    B allows it we prefer >= 2 batch blocks so both v7x TensorCores get work
    on the "parallel" axis.  T_blk is a divisor of T, preferably a multiple
    of 8 so the dynamic sublane store into the score scratch stays aligned.
    """
    if B % 8 == 0:
        bb_cands = [d for d in _divisors_desc(B) if d % 8 == 0]
        if len(bb_cands) > 1:                 # prefer >= 2 parallel blocks
            bb_cands = bb_cands[1:] + bb_cands[:1]
    else:
        bb_cands = [B]

    t_all = _divisors_desc(T)
    t_cands = [d for d in t_all if d % 8 == 0] + [d for d in t_all if d % 8 != 0]

    def footprint(bb, tb):
        enc_buf = 2 * tb * bb * H * enc_itemsize   # double-buffered enc block
        energy = 2 * tb * bb * H * 4               # f32 energy (+ reshape copy)
        hp_buf = 2 * bb * H * 4
        w_buf = 2 * (H * H + H) * 4
        out_buf = 2 * T * bb * 4 + T * bb * 4      # out block (x2) + scratch
        return enc_buf + energy + hp_buf + w_buf + out_buf

    for bb in bb_cands:
        for tb in t_cands:
            if footprint(bb, tb) <= budget_bytes:
                return bb, tb
    return bb_cands[-1], t_cands[-1]               # smallest; let compiler cope


@jax.jit
def attention_forward(hidden, encoder_outputs, len_seq, W, b, v):
    """hidden: (B, H); encoder_outputs: (T, B, H); len_seq: (B,) int.

    Returns (B, 1, T) float32, matching the PyTorch module output.
    """
    T, B, H = encoder_outputs.shape
    f32 = jnp.float32

    # Hoisted, T-invariant hidden projection: Linear(cat([h, e])) split into
    # h @ Wh^T + b (once, here) and e @ We^T (per T block, in the kernel).
    hid_proj = hidden.astype(f32) @ W[:, :H].T.astype(f32) + b.astype(f32)  # (B,H)
    we_t = W[:, H:].T                                        # (H, H)
    v_row = v.reshape(1, H).astype(f32)
    lens = len_seq.astype(jnp.int32).reshape(1, B)

    budget, vmem_limit = _vmem_budget_and_limit()
    BB, T_blk = _choose_blocks(B, T, H, encoder_outputs.dtype.itemsize, budget)
    grid = (B // BB, T // T_blk)

    cost = pl.CostEstimate(
        flops=2 * B * T * H * H + 2 * B * T * H,
        transcendentals=B * T,
        bytes_accessed=(B * T * H * encoder_outputs.dtype.itemsize
                        + B * H * 4 + H * H * W.dtype.itemsize + H * 4
                        + B * T * 4),
    )

    out_tb = pl.pallas_call(
        attention_kernel,
        out_shape=jax.ShapeDtypeStruct((T, B), jnp.float32),
        grid_spec=pltpu.PrefetchScalarGridSpec(
            num_scalar_prefetch=0,
            grid=grid,
            in_specs=[
                pl.BlockSpec((1, BB), lambda bi, ti: (0, bi)),            # lengths
                pl.BlockSpec((BB, H), lambda bi, ti: (bi, 0)),            # hid_proj
                pl.BlockSpec((T_blk, BB, H), lambda bi, ti: (ti, bi, 0)),  # enc (T,B,H)
                pl.BlockSpec((H, H), lambda bi, ti: (0, 0)),              # We^T
                pl.BlockSpec((1, H), lambda bi, ti: (0, 0)),              # v
            ],
            out_specs=pl.BlockSpec((T, BB), lambda bi, ti: (0, bi)),      # weights
            scratch_shapes=[pltpu.VMEM((T, BB), jnp.float32)],            # scores
        ),
        compiler_params=pltpu.CompilerParams(
            dimension_semantics=("parallel", "arbitrary"),
            vmem_limit_bytes=vmem_limit),
        cost_estimate=cost,
    )(lens, hid_proj, encoder_outputs, we_t, v_row)

    # Only the tiny (T, B) score slab is transposed in XLA; the big encoder
    # tensor was streamed in its native layout.  (B, T) -> (B, 1, T).
    return jnp.transpose(out_tb)[:, None, :]


def attention_reference(hidden, encoder_outputs, len_seq, W, b, v):
    """Pure-JAX reference mirroring the PyTorch forward."""
    T, B, H = encoder_outputs.shape
    h = jnp.broadcast_to(hidden[None], (T, B, H)).transpose(1, 0, 2)
    e = encoder_outputs.transpose(1, 0, 2)
    x = jnp.concatenate([h, e], axis=2)                      # (B, T, 2H)
    energy = jax.nn.relu(x @ W.T + b)                        # (B, T, H)
    scores = energy @ v                                      # (B, T)
    idx = jnp.arange(T)[None, :]
    mask = idx < len_seq[:, None]
    s = jnp.where(mask, scores, -jnp.inf)
    p = jax.nn.softmax(s, axis=1)
    p = jnp.where(mask, p, 0.0)
    return p[:, None, :]                                     # (B, 1, T)


if __name__ == "__main__":
    B, T, H = 2, 8, 32

    key = jax.random.PRNGKey(0)
    k_hid, k_enc, k_w, k_b, k_v = jax.random.split(key, 5)

    hidden = jax.random.normal(k_hid, (B, H), dtype=jnp.float32)
    encoder_outputs = jax.random.normal(k_enc, (T, B, H), dtype=jnp.float32)
    len_seq = jnp.array([T, 5], dtype=jnp.int32)             # one full, one padded
    # NOTE: len_seq[i] == 0 yields NaN in both kernel and reference (empty softmax).

    # Deterministic parameter init (shapes match nn.Linear(2H, H) and v).
    stdv = 1.0 / (H ** 0.5)
    W = jax.random.uniform(k_w, (H, 2 * H), jnp.float32, -stdv, stdv)
    b = jax.random.uniform(k_b, (H,), jnp.float32, -stdv, stdv)
    v = jax.random.uniform(k_v, (H,), jnp.float32, -stdv, stdv)

    out = attention_forward(hidden, encoder_outputs, len_seq, W, b, v)
    out = jax.block_until_ready(out)

    ref = attention_reference(hidden, encoder_outputs, len_seq, W, b, v)
    assert out.shape == (B, 1, T), out.shape
    assert jnp.allclose(out, ref, atol=2e-5, rtol=2e-5), "mismatch vs reference"

    print("KERNEL_OK")
</pallas_src>

<mosaic_0001>
module attributes {stable_mosaic.version = 11 : i64} {
  func.func @attention_kernel(%arg0: i32, %arg1: i32, %arg2: memref<1x2xi32, #tpu.memory_space<vmem>>, %arg3: memref<2x32xf32, #tpu.memory_space<vmem>>, %arg4: memref<8x2x32xf32, #tpu.memory_space<vmem>>, %arg5: memref<32x32xf32, #tpu.memory_space<vmem>>, %arg6: memref<1x32xf32, #tpu.memory_space<vmem>>, %arg7: memref<8x2xf32, #tpu.memory_space<vmem>>, %arg8: memref<8x2xf32, #tpu.memory_space<vmem>>) attributes {dimension_semantics = [#tpu.dimension_semantics<parallel>, #tpu.dimension_semantics<arbitrary>], iteration_bounds = array<i64: 1, 1>, scalar_prefetch = 0 : i64, scratch_operands = 1 : i64, tpu.core_type = #tpu.core_type<tc>, window_params = [{transform_indices = @transform_0, window_bounds = array<i64: 1, 2>}, {transform_indices = @transform_1, window_bounds = array<i64: 2, 32>}, {transform_indices = @transform_2, window_bounds = array<i64: 8, 2, 32>}, {pipeline_mode = #tpu.pipeline_mode<synchronous>, transform_indices = @transform_3, window_bounds = array<i64: 32, 32>}, {pipeline_mode = #tpu.pipeline_mode<synchronous>, transform_indices = @transform_4, window_bounds = array<i64: 1, 32>}, {transform_indices = @transform_5, window_bounds = array<i64: 8, 2>}]} {
    %c0 = arith.constant 0 : index
    %c0_0 = arith.constant 0 : index
    %c0_1 = arith.constant 0 : index
    %0 = vector.load %arg4[%c0, %c0_0, %c0_1] : memref<8x2x32xf32, #tpu.memory_space<vmem>>, vector<8x2x32xf32>
    %1 = vector.shape_cast %0 : vector<8x2x32xf32> to vector<16x32xf32>
    %c0_2 = arith.constant 0 : index
    %c0_3 = arith.constant 0 : index
    %2 = vector.load %arg5[%c0_2, %c0_3] : memref<32x32xf32, #tpu.memory_space<vmem>>, vector<32x32xf32>
    %cst = arith.constant dense<0.000000e+00> : vector<16x32xf32>
    %3 = tpu.matmul %1, %2, %cst {dimension_numbers = #tpu.dot_dimension_numbers<[1], [0], [0], [1], [0, 0, 1, 1], [], []>} : vector<16x32xf32>, vector<32x32xf32>, vector<16x32xf32> -> vector<16x32xf32>
    %4 = vector.shape_cast %3 : vector<16x32xf32> to vector<8x2x32xf32>
    %c0_4 = arith.constant 0 : index
    %c0_5 = arith.constant 0 : index
    %5 = vector.load %arg3[%c0_4, %c0_5] : memref<2x32xf32, #tpu.memory_space<vmem>>, vector<2x32xf32>
    %6 = vector.shape_cast %5 : vector<2x32xf32> to vector<1x2x32xf32>
    %7 = vector.broadcast %6 : vector<1x2x32xf32> to vector<8x2x32xf32>
    %8 = arith.addf %4, %7 : vector<8x2x32xf32>
    %cst_6 = arith.constant 0.000000e+00 : f32
    %9 = vector.broadcast %cst_6 : f32 to vector<8x2x32xf32>
    %10 = arith.maximumf %8, %9 : vector<8x2x32xf32>
    %c0_7 = arith.constant 0 : index
    %c0_8 = arith.constant 0 : index
    %11 = vector.load %arg6[%c0_7, %c0_8] : memref<1x32xf32, #tpu.memory_space<vmem>>, vector<1x32xf32>
    %12 = vector.shape_cast %11 : vector<1x32xf32> to vector<1x1x32xf32>
    %13 = vector.broadcast %12 : vector<1x1x32xf32> to vector<8x2x32xf32>
    %14 = arith.mulf %10, %13 : vector<8x2x32xf32>
    %cst_9 = arith.constant dense<0.000000e+00> : vector<8x2xf32>
    %15 = vector.multi_reduction <add>, %14, %cst_9 [2] : vector<8x2x32xf32> to vector<8x2xf32>
    %c8_i32 = arith.constant 8 : i32
    %16 = arith.muli %arg1, %c8_i32 : i32
    %17 = tpu.assume_multiple %16, 8 : i32
    %18 = arith.index_cast %17 : i32 to index
    %c0_10 = arith.constant 0 : index
    %19 = vector.load %arg8[%18, %c0_10] : memref<8x2xf32, #tpu.memory_space<vmem>>, vector<8x2xf32>
    tpu.vector_store %arg8[%18, %c0_10], %15 {strides = array<i32>} : memref<8x2xf32, #tpu.memory_space<vmem>>, vector<8x2xf32>,
    %c0_i32 = arith.constant 0 : i32
    %20 = arith.cmpi eq, %arg1, %c0_i32 : i32
    %21 = arith.extui %20 : i1 to i32
    %c0_i32_11 = arith.constant 0 : i32
    %22 = arith.cmpi ne, %21, %c0_i32_11 : i32
    scf.if %22 {
      %c0_12 = arith.constant 0 : index
      %c0_13 = arith.constant 0 : index
      %23 = vector.load %arg8[%c0_12, %c0_13] : memref<8x2xf32, #tpu.memory_space<vmem>>, vector<8x2xf32>
      %c0_14 = arith.constant 0 : index
      %c0_15 = arith.constant 0 : index
      %24 = vector.load %arg2[%c0_14, %c0_15] : memref<1x2xi32, #tpu.memory_space<vmem>>, vector<1x2xi32>
      %25 = tpu.iota {dimensions = array<i32: 0>} : vector<8x2xi32>
      %26 = vector.broadcast %24 : vector<1x2xi32> to vector<8x2xi32>
      %27 = arith.cmpi slt, %25, %26 : vector<8x2xi32>
      %cst_16 = arith.constant 0xFF800000 : f32
      %28 = vector.broadcast %cst_16 : f32 to vector<8x2xf32>
      %29 = arith.select %27, %23, %28 : vector<8x2xi1>, vector<8x2xf32>
      %cst_17 = arith.constant dense<0xFF800000> : vector<2xf32>
      %30 = vector.multi_reduction <maximumf>, %29, %cst_17 [0] : vector<8x2xf32> to vector<2xf32>
      %31 = vector.shape_cast %30 : vector<2xf32> to vector<1x2xf32>
      %32 = vector.broadcast %31 : vector<1x2xf32> to vector<8x2xf32>
      %33 = arith.subf %29, %32 : vector<8x2xf32>
      %34 = math.exp %33 : vector<8x2xf32>
      %cst_18 = arith.constant 0.000000e+00 : f32
      %35 = vector.broadcast %cst_18 : f32 to vector<8x2xf32>
      %36 = arith.select %27, %34, %35 : vector<8x2xi1>, vector<8x2xf32>
      %cst_19 = arith.constant dense<0.000000e+00> : vector<2xf32>
      %37 = vector.multi_reduction <add>, %36, %cst_19 [0] : vector<8x2xf32> to vector<2xf32>
      %38 = vector.shape_cast %37 : vector<2xf32> to vector<1x2xf32>
      %39 = tpu.reciprocal %38 {approx = true} : vector<1x2xf32> -> vector<1x2xf32>
      %40 = arith.mulf %38, %39 : vector<1x2xf32>
      %cst_20 = arith.constant 2.000000e+00 : f32
      %41 = vector.broadcast %cst_20 : f32 to vector<1x2xf32>
      %42 = arith.subf %41, %40 : vector<1x2xf32>
      %43 = arith.mulf %39, %42 : vector<1x2xf32>
      %44 = vector.broadcast %43 : vector<1x2xf32> to vector<8x2xf32>
      %45 = arith.mulf %36, %44 : vector<8x2xf32>
      %c0_21 = arith.constant 0 : index
      %c0_22 = arith.constant 0 : index
      %46 = vector.load %arg7[%c0_21, %c0_22] : memref<8x2xf32, #tpu.memory_space<vmem>>, vector<8x2xf32>
      tpu.vector_store %arg7[%c0_21, %c0_22], %45 {strides = array<i32>} : memref<8x2xf32, #tpu.memory_space<vmem>>, vector<8x2xf32>,
    } else {
    }
    return
  }
  func.func @transform_0(%arg0: i32, %arg1: i32) -> (i32, i32) {
    %c0_i32 = arith.constant 0 : i32
    %c0_i32_0 = arith.constant 0 : i32
    return %c0_i32, %arg0 : i32, i32
  }
  func.func @transform_1(%arg0: i32, %arg1: i32) -> (i32, i32) {
    %c0_i32 = arith.constant 0 : i32
    %c0_i32_0 = arith.constant 0 : i32
    return %arg0, %c0_i32 : i32, i32
  }
  func.func @transform_2(%arg0: i32, %arg1: i32) -> (i32, i32, i32) {
    %c0_i32 = arith.constant 0 : i32
    %c0_i32_0 = arith.constant 0 : i32
    return %arg1, %arg0, %c0_i32 : i32, i32, i32
  }
  func.func @transform_3(%arg0: i32, %arg1: i32) -> (i32, i32) {
    %c0_i32 = arith.constant 0 : i32
    %c0_i32_0 = arith.constant 0 : i32
    %c0_i32_1 = arith.constant 0 : i32
    return %c0_i32, %c0_i32_0 : i32, i32
  }
  func.func @transform_4(%arg0: i32, %arg1: i32) -> (i32, i32) {
    %c0_i32 = arith.constant 0 : i32
    %c0_i32_0 = arith.constant 0 : i32
    %c0_i32_1 = arith.constant 0 : i32
    return %c0_i32, %c0_i32_0 : i32, i32
  }
  func.func @transform_5(%arg0: i32, %arg1: i32) -> (i32, i32) {
    %c0_i32 = arith.constant 0 : i32
    %c0_i32_0 = arith.constant 0 : i32
    return %c0_i32, %arg0 : i32, i32
  }
}

</mosaic_0001>

<llo_original>
// kernel: attention_forward.1
$region0: #{attention_forward.1}
  #allocation0 [shape = 'u32[]', space=smem, size = 0x4, offset = 0x4, fixed_abs, tag = 'smem constant byte address 0x4 - core index']
  #allocation1 [shape = 'u32[72,128]{1,0:T(1,128)}', space=vmem, size = 0x9000, scoped, tag = 'internal scratch']
  #allocation2 [shape = 'f32[8,2]{1,0:T(8,128)}', space=vmem, size = 0x1000, scoped, tag = 'scratch operand']
  %s0 = inlined_call_operand.vmem [shape: s32[1,2], index: 0, kind: input, shape index: {}]
  %s1 = inlined_call_operand.vmem [shape: f32[2,32], index: 1, kind: input, shape index: {}]
  %s2 = inlined_call_operand.vmem [shape: f32[8,2,32], index: 2, kind: input, shape index: {}]
  %s3 = inlined_call_operand.vmem [shape: f32[32,32], index: 3, kind: input, shape index: {}]
  %s4 = inlined_call_operand.vmem [shape: f32[1,32], index: 4, kind: input, shape index: {}]
  %s5 = inlined_call_operand.vmem [shape: f32[8,2], index: 5, kind: output, shape index: {}]
  %s6 = sld [smem:[#allocation0]]
  $region34: #{attention_forward.1} parent=0
    _
  %s8 = ssub.s32 1, %s6
  %s9 = scalar_select 0, %s8, %s6
  // Predicated region
  $region2: #{attention_forward.1} parent=0 // pred_check
    _
  $region3: #{attention_forward.1} parent=0 // pred_check_branch
    %11 = sbr.rel (0) target = $region5
  $region4: #{attention_forward.1} parent=0 // pred_region
    _
  $region5: #{attention_forward.1} parent=0 // pred_fallthru
    _
  // Predicated region
  $region6: #{attention_forward.1} parent=0 // pred_check
    _
  $region7: #{attention_forward.1} parent=0 // pred_check_branch
    %13 = sbr.rel (0) target = $region9
  $region8: #{attention_forward.1} parent=0 // pred_region
    _
  $region9: #{attention_forward.1} parent=0 // pred_fallthru
    _
  // Predicated region
  $region10: #{attention_forward.1} parent=0 // pred_check
    _
  $region11: #{attention_forward.1} parent=0 // pred_check_branch
    %15 = sbr.rel (0) target = $region13
  $region12: #{attention_forward.1} parent=0 // pred_region
    _
  $region13: #{attention_forward.1} parent=0 // pred_fallthru
    _
  // Predicated region
  $region14: #{attention_forward.1} parent=0 // pred_check
    _
  $region15: #{attention_forward.1} parent=0 // pred_check_branch
    %17 = sbr.rel (0) target = $region17
  $region16: #{attention_forward.1} parent=0 // pred_region
    _
  $region17: #{attention_forward.1} parent=0 // pred_fallthru
    _
  // Predicated region
  $region18: #{attention_forward.1} parent=0 // pred_check
    _
  $region19: #{attention_forward.1} parent=0 // pred_check_branch
    %19 = sbr.rel (0) target = $region21
  $region20: #{attention_forward.1} parent=0 // pred_region
    _
  $region21: #{attention_forward.1} parent=0 // pred_fallthru
    _
  %v20 = vld [vmem:[%s2] sm:$0x3]
  %v21 = vld [vmem:[%s2 + $0x2] sm:$0x3]
  %v22 = vld [vmem:[%s2 + $0x4] sm:$0x3]
  %v23 = vld [vmem:[%s2 + $0x6] sm:$0x3]
  %v24 = vld [vmem:[%s2 + $0x8] sm:$0x3]
  %v25 = vld [vmem:[%s2 + $0xa] sm:$0x3]
  %v26 = vld [vmem:[%s2 + $0xc] sm:$0x3]
  %v27 = vld [vmem:[%s2 + $0xe] sm:$0x3]
  %v28 = vld [vmem:[%s3] sm:$0xff]
  %v29 = vld [vmem:[%s3 + $0x8] sm:$0xff]
  %v30 = vld [vmem:[%s3 + $0x10] sm:$0xff]
  %v31 = vld [vmem:[%s3 + $0x18] sm:$0xff]
  %40 = vst [vmem:[#allocation1] ss:$4 sm:$0xff] %v20
  %s41 = scalar_lea.vmem [#allocation1], 1
  %42 = vst [vmem:[%s41] ss:$4 sm:$0xff] %v21
  %s43 = scalar_lea.vmem [#allocation1], 2
  %44 = vst [vmem:[%s43] ss:$4 sm:$0xff] %v22
  %s45 = scalar_lea.vmem [#allocation1], 3
  %46 = vst [vmem:[%s45] ss:$4 sm:$0xff] %v23
  %s47 = scalar_lea.vmem [#allocation1], 32
  %48 = vst [vmem:[%s47] ss:$4 sm:$0xff] %v24
  %s49 = scalar_lea.vmem [#allocation1], 33
  %50 = vst [vmem:[%s49] ss:$4 sm:$0xff] %v25
  %s51 = scalar_lea.vmem [#allocation1], 34
  %52 = vst [vmem:[%s51] ss:$4 sm:$0xff] %v26
  %s53 = scalar_lea.vmem [#allocation1], 35
  %54 = vst [vmem:[%s53] ss:$4 sm:$0xff] %v27
  %v55 = vld.sshfl [vmem:[#allocation1] sm:$0xff pattern:$0x73625140]
  %v56 = vld.sshfl [vmem:[#allocation1 + $0x20] sm:$0xff pattern:$0x73625140]
  %vm57 = vcmask 261120
  %v58 = vsel %vm57, %v55, 0
  %v60 = vsel %vm57, %v56, 0
  %62 = vmatpush.msra.mxu0 0.0
  %63 = vmatpush.msra.mxu0 0.0
  %64 = vmatpush.msra.mxu0 0.0
  %65 = vmatpush.msra.mxu0 0.0
  %66 = vmatpush.msra.mxu0 0.0
  %67 = vmatpush.msra.mxu0 0.0
  %68 = vmatpush.msra.mxu0 0.0
  %69 = vmatpush.msra.mxu0 0.0
  %70 = vmatpush.msra.mxu0 0.0
  %71 = vmatpush.msra.mxu0 0.0
  %72 = vmatpush.msra.mxu0 0.0
  %73 = vmatpush.msra.mxu0 0.0
  %74 = vmatpush.msra.mxu0 %v31
  %75 = vmatpush.msra.mxu0 %v30
  %76 = vmatpush.msra.mxu0 %v29
  %77 = vmatpush.msra.mxu0 %v28
  %78 = vmatmul.f32.gmra.mxu0 %v58
  %v79 = vpop.f32.mrf.mxu0
  %v80 = vadd.f32 0.0, %v79
  %81 = vmatmul.f32.gmra.mxu0 %v60
  %v82 = vpop.f32.mrf.mxu0
  %v83 = vadd.f32 0.0, %v82
  %84 = vdwg.mxu0
  %v87 = vrot.slane %v80, 2
  %v88 = vrot.slane %v80, 4
  %v89 = vrot.slane %v80, 6
  %v90 = vrot.slane %v83, 2
  %v91 = vrot.slane %v83, 4
  %v92 = vrot.slane %v83, 6
  %v99 = vld [vmem:[%s1] sm:$0x3]
  %v100 = vadd.f32 %v80, %v99
  %v101 = vadd.f32 %v87, %v99
  %v102 = vadd.f32 %v88, %v99
  %v103 = vadd.f32 %v89, %v99
  %v104 = vadd.f32 %v83, %v99
  %v105 = vadd.f32 %v90, %v99
  %v106 = vadd.f32 %v91, %v99
  %v107 = vadd.f32 %v92, %v99
  %v108 = vmax.f32 %v100, 0.0
  %v109 = vmax.f32 %v101, 0.0
  %v110 = vmax.f32 %v102, 0.0
  %v111 = vmax.f32 %v103, 0.0
  %v112 = vmax.f32 %v104, 0.0
  %v113 = vmax.f32 %v105, 0.0
  %v114 = vmax.f32 %v106, 0.0
  %v115 = vmax.f32 %v107, 0.0
  %v116 = vld [vmem:[%s4] sm:$0x1]
  %v118 = vperm.slane %v116, 0
  %v120 = vmul.f32 %v108, %v118
  %v121 = vmul.f32 %v109, %v118
  %v122 = vmul.f32 %v110, %v118
  %v123 = vmul.f32 %v111, %v118
  %v124 = vmul.f32 %v112, %v118
  %v125 = vmul.f32 %v113, %v118
  %v126 = vmul.f32 %v114, %v118
  %v127 = vmul.f32 %v115, %v118
  %vm128 = vcmask 254976
  %v129 = vsel %vm128, %v120, 0.0
  %130 = vadd.xlane.f32.xlu0 %v129
  %v131 = vpop.xlane.xlu0 %130
  %v132 = vsel %vm128, %v121, 0.0
  %133 = vadd.xlane.f32.xlu0 %v132
  %v134 = vpop.xlane.xlu0 %133
  %v135 = vsel %vm128, %v122, 0.0
  %136 = vadd.xlane.f32.xlu0 %v135
  %v137 = vpop.xlane.xlu0 %136
  %v138 = vsel %vm128, %v123, 0.0
  %139 = vadd.xlane.f32.xlu0 %v138
  %v140 = vpop.xlane.xlu0 %139
  %v141 = vsel %vm128, %v124, 0.0
  %142 = vadd.xlane.f32.xlu0 %v141
  %v143 = vpop.xlane.xlu0 %142
  %v144 = vsel %vm128, %v125, 0.0
  %145 = vadd.xlane.f32.xlu0 %v144
  %v146 = vpop.xlane.xlu0 %145
  %v147 = vsel %vm128, %v126, 0.0
  %148 = vadd.xlane.f32.xlu0 %v147
  %v149 = vpop.xlane.xlu0 %148
  %v150 = vsel %vm128, %v127, 0.0
  %151 = vadd.xlane.f32.xlu0 %v150
  %v152 = vpop.xlane.xlu0 %151
  %s153 = smul.u32 0, 8
  %v162 = vlaneseq
  %v163 = vand.u32 %v162, 127
  %v164 = vperm.slane %v131, %v163
  %v165 = vperm.slane %v134, %v163
  %v166 = vperm.slane %v137, %v163
  %v167 = vperm.slane %v140, %v163
  %v168 = vperm.slane %v143, %v163
  %v169 = vperm.slane %v146, %v163
  %v170 = vperm.slane %v149, %v163
  %v171 = vperm.slane %v152, %v163
  %vm172 = vcmask 1041409
  %v173 = vsel %vm172, %v165, %v164
  %vm174 = vcmask 1042434
  %v175 = vsel %vm174, %v166, %v173
  %vm176 = vcmask 1043459
  %v177 = vsel %vm176, %v167, %v175
  %vm178 = vcmask 1044484
  %v179 = vsel %vm178, %v168, %v177
  %vm180 = vcmask 1045509
  %v181 = vsel %vm180, %v169, %v179
  %vm182 = vcmask 1046534
  %v183 = vsel %vm182, %v170, %v181
  %vm184 = vcmask 1047559
  %v185 = vsel %vm184, %v171, %v183
  %s187 = scalar_lea.vmem [#allocation2], %s153
  %vm188 = vcmask 15360
  %189 = vst.msk [vmem:[%s187] sm:$0xff] %vm188, %v185
  %p190 = scmp.eq.s32.totalorder 0, 0
  // Predicated region
  $region22: #{attention_forward.1} parent=0 // pred_check
    %p191 = pneg %p190
  $region23: #{attention_forward.1} parent=0 // pred_check_branch
    %193 = sbr.rel (%p191) target = $region25
  $region24: #{attention_forward.1} parent=0 // pred_region
    %v194 = vld [vmem:[#allocation2] sm:$0xff]
    %v195 = vld [vmem:[%s0] sm:$0x1]
    %v196 = vlaneseq
    %v197 = vshrl.u32 %v196, 7
    %v198 = vperm.slane %v195, 0
    %vm199 = vcmp.lt.s32.totalorder %v197, %v198
    %v200 = vsel %vm199, %v194, -inf
    %v201 = vsel %vm188, %v200, -inf
    %v202 = vrot.slane %v201, 4
    %v203 = vmax.f32 %v201, %v202
    %v204 = vrot.slane %v203, 2
    %v205 = vmax.f32 %v203, %v204
    %v206 = vrot.slane %v205, 1
    %v207 = vmax.f32 %v205, %v206
    %v208 = vsub.f32 %v200, %v207
    %v209 = vmul.f32 %v208, 1.442695
    %v210 = vpow.pop %v209
    %v211 = vsel %vm199, %v210, 0.0
    %v212 = vsel %vm188, %v211, 0.0
    %v213 = vrot.slane %v212, 4
    %v214 = vadd.f32 %v212, %v213
    %v215 = vrot.slane %v214, 2
    %v216 = vadd.f32 %v214, %v215
    %v217 = vrot.slane %v216, 1
    %v218 = vadd.f32 %v216, %v217
    %v219 = vrcp.pop %v218
    %v220 = vmul.f32 %v218, %v219
    %v221 = vsub.f32 2.0, %v220
    %v222 = vmul.f32 %v219, %v221
    %v223 = vmul.f32 %v211, %v222
    %224 = vst.msk [vmem:[%s5] sm:$0xff] %vm188, %v223
  $region25: #{attention_forward.1} parent=0 // pred_fallthru
    _
  // Predicated region
  $region26: #{attention_forward.1} parent=0 // pred_check
    _
  $region27: #{attention_forward.1} parent=0 // pred_check_branch
    %226 = sbr.rel (0) target = $region29
  $region28: #{attention_forward.1} parent=0 // pred_region
    _
  $region29: #{attention_forward.1} parent=0 // pred_fallthru
    _
  // Predicated region
  $region30: #{attention_forward.1} parent=0 // pred_check
    _
  $region31: #{attention_forward.1} parent=0 // pred_check_branch
    %228 = sbr.rel (0) target = $region33
  $region32: #{attention_forward.1} parent=0 // pred_region
    _
  $region33: #{attention_forward.1} parent=0 // pred_fallthru
    _

</llo_original>
